<compile_context>
chip_gen: v6e
topology: v6e:2x2x1
jax: 0.10.0
libtpu: 0.0.40
codegen_flags: <defaults>
</compile_context>

<pallas_src>
import functools

import numpy as np
import jax
import jax.numpy as jnp
from jax.experimental import pallas as pl
from jax.experimental.pallas import tpu as pltpu


def _round_up(x, m):
    return (x + m - 1) // m * m


def _vmem_capacity_bytes():
    """Per-TensorCore VMEM capacity; conservative 64 MiB (v7x) fallback."""
    try:
        info = pltpu.get_tpu_info()
        cap = int(getattr(info, "vmem_capacity_bytes", 0) or 0)
        if cap > 0:
            return cap
    except Exception:
        pass
    return 64 * 1024 * 1024


@functools.lru_cache(maxsize=None)
def _folded_cosine_matrix(n, k_pad):
    """C[k, j] = cos(2*pi*k*j/n) / n for the folded half-spectrum, zero-padded
    to k_pad rows. Built in float64 with an integer (k*j) mod n phase so the
    angle stays exact even when k*j exceeds the f32 mantissa. Memoized."""
    k_fold = n // 2 + 1 if n % 2 == 0 else (n + 1) // 2
    k = np.arange(k_fold, dtype=np.int64)[:, None]
    j = np.arange(n, dtype=np.int64)[None, :]
    phase = 2.0 * np.pi * ((k * j) % n).astype(np.float64) / n
    c = np.cos(phase) / n
    if k_pad > k_fold:
        c = np.concatenate([c, np.zeros((k_pad - k_fold, n), np.float64)], axis=0)
    return c.astype(np.float32)


def _fold_real_input(x2d):
    """Fold x[k] + x[N-k] (cosine symmetry of a real input)."""
    n = x2d.shape[-1]
    if n % 2 == 0:
        half = n // 2
        head = x2d[:, :1]
        mid = x2d[:, 1:half] + x2d[:, :half:-1]      # k = 1..half-1 paired with N-k
        tail = x2d[:, half:half + 1]                  # Nyquist bin, unpaired
        return jnp.concatenate([head, mid, tail], axis=1)
    halfc = (n + 1) // 2
    head = x2d[:, :1]
    mid = x2d[:, 1:halfc] + x2d[:, :halfc - 1:-1]
    return jnp.concatenate([head, mid], axis=1)


def _ifft_real_kernel(x_ref, c_ref, o_ref):
    # x_ref: (tm, Kp) folded-input tile, c_ref: (Kp, tn) cosine tile,
    # o_ref: (tm, tn) output tile. MXU matmul with f32 accumulation.
    o_ref[...] = jnp.dot(
        x_ref[...], c_ref[...], preferred_element_type=jnp.float32
    ).astype(o_ref.dtype)


@functools.partial(jax.jit, static_argnames=("tm", "compute_dtype", "out_dtype"))
def ifft1d_real(hidden_state, *, tm=512, compute_dtype=jnp.float32, out_dtype=None):
    """Equivalent of torch.fft.ifft(hidden_state, dim=-1).real for real input."""
    if jnp.issubdtype(hidden_state.dtype, jnp.complexfloating):
        # TODO(synk): complex input would additionally need a sine matmul on the
        # imaginary part; the DTE-AD model only feeds real activations here.
        raise NotImplementedError("IFFT1DLayer Pallas kernel assumes real input.")

    orig_shape = hidden_state.shape
    n = orig_shape[-1]
    x2d = hidden_state.reshape(-1, n)
    if not jnp.issubdtype(x2d.dtype, jnp.floating):
        x2d = x2d.astype(jnp.float32)
    m = x2d.shape[0]

    compute_dtype = np.dtype(compute_dtype)
    if out_dtype is None:
        out_dtype = x2d.dtype            # torch: .real keeps the input float dtype
    out_dtype = np.dtype(out_dtype)

    # ---- wrapper prep (one fused read-x / write-xf pass under jit) ----------
    # Fold in the wider of (input, compute) dtype so x[k] + x[N-k] stays exact
    # when compute is bf16; no up-cast when input and compute already match.
    fold_dtype = jnp.promote_types(x2d.dtype, compute_dtype)
    xf = _fold_real_input(x2d.astype(fold_dtype))
    k_fold = xf.shape[1]
    k_pad = _round_up(k_fold, 128)        # MXU-native contraction width
    if k_pad != k_fold:
        xf = jnp.pad(xf, ((0, 0), (0, k_pad - k_fold)))
    xf = xf.astype(compute_dtype)

    # Folded cosine IDFT matrix: built once per (n, k_pad), memoized host-side,
    # embedded as a constant under jit (no per-call N^2 cos evaluations).
    c = jnp.asarray(_folded_cosine_matrix(n, k_pad), dtype=compute_dtype)

    el_bytes = compute_dtype.itemsize
    out_bytes = out_dtype.itemsize
    row_mult = 16 if el_bytes == 2 else 8

    # ---- VMEM budgets (generation aware: 128 MiB v5e/v6e, 64 MiB v7x) -------
    vmem_cap = _vmem_capacity_bytes()
    vmem_cap_limit = (vmem_cap * 13) // 16       # leave compiler headroom
    c_budget = vmem_cap_limit // 2

    # ---- column tiling of C --------------------------------------------------
    c_bytes = k_pad * n * el_bytes
    if c_bytes <= c_budget:
        tn = n                                    # grid-invariant: DMA'd once, resident
        single_buffer_c = c_bytes > (8 << 20)     # only bother for a big C
        c_bufs = 1 if single_buffer_c else 2
    else:
        tn = max(128, min(n, (c_budget // (2 * k_pad * el_bytes)) // 128 * 128))
        single_buffer_c = False
        c_bufs = 2
    grid_n = pl.cdiv(n, tn)                       # ragged last column block is masked

    # ---- row tiling: no M padding; cdiv grid + masked ragged last block -----
    if m <= tm:
        tm_eff = m
        grid_m = 1
        if grid_n == 1 and m >= 2 * row_mult:
            # guarantee >= 2 grid steps so both v7x TensorCores get work
            tm_eff = _round_up(pl.cdiv(m, 2), row_mult)
            grid_m = pl.cdiv(m, tm_eff)
    else:
        tm_eff = _round_up(tm, row_mult)
        grid_m = pl.cdiv(m, tm_eff)

    def _tiles_bytes(tm_e):
        return (2 * tm_e * k_pad * el_bytes
                + c_bufs * k_pad * tn * el_bytes
                + 2 * tm_e * tn * out_bytes)

    # keep the tile set <= ~75% of the scoped-VMEM request
    while _tiles_bytes(tm_eff) > (vmem_cap_limit * 3) // 4 and tm_eff > row_mult:
        tm_eff = max(row_mult, _round_up(pl.cdiv(tm_eff, 2), row_mult))
        grid_m = pl.cdiv(m, tm_eff)
    vmem_need = _tiles_bytes(tm_eff)
    vmem_limit = max(32 * 1024 * 1024, (vmem_need * 13) // 10)
    vmem_limit = min(vmem_limit, vmem_cap_limit)
    vmem_limit = max(vmem_limit, vmem_need)

    # ---- operand ordering: when C is column-tiled, re-fetch the smaller one --
    swap = (grid_n > 1) and (m * k_pad < k_pad * n)
    if swap:
        grid = (grid_n, grid_m)
        x_map = lambda j, i: (i, 0)
        c_map = lambda j, i: (0, j)
        o_map = lambda j, i: (i, j)
    else:
        grid = (grid_m, grid_n)
        x_map = lambda i, j: (i, 0)
        c_map = lambda i, j: (0, j)
        o_map = lambda i, j: (i, j)

    c_spec = pl.BlockSpec((k_pad, tn), c_map)
    if single_buffer_c:
        try:  # a grid-invariant input does not need double buffering
            c_spec = pl.BlockSpec((k_pad, tn), c_map, pipeline_mode=pl.Buffered(1))
        except (TypeError, ValueError, AttributeError):
            c_spec = pl.BlockSpec((k_pad, tn), c_map)

    cost = pl.CostEstimate(
        flops=2 * m * k_pad * n,
        transcendentals=0,
        bytes_accessed=(m * k_pad * el_bytes + k_pad * n * el_bytes
                        + m * n * out_bytes),
    )

    out2d = pl.pallas_call(
        _ifft_real_kernel,
        out_shape=jax.ShapeDtypeStruct((m, n), out_dtype),
        grid_spec=pltpu.PrefetchScalarGridSpec(
            num_scalar_prefetch=0,
            grid=grid,
            in_specs=[pl.BlockSpec((tm_eff, k_pad), x_map), c_spec],
            out_specs=pl.BlockSpec((tm_eff, tn), o_map),
        ),
        compiler_params=pltpu.CompilerParams(
            dimension_semantics=("parallel", "parallel"),
            vmem_limit_bytes=vmem_limit,
        ),
        cost_estimate=cost,
    )(xf, c)

    return out2d.reshape(orig_shape)


if __name__ == "__main__":
    key = jax.random.PRNGKey(0)
    batch, channels, seq = 2, 4, 128  # FFT axis last, matches torch dim=-1
    hidden_state = jax.random.normal(key, (batch, channels, seq), dtype=jnp.float32)

    # Reference: real part of the complex IFFT along the last axis.
    ref = jnp.real(jnp.fft.ifft(hidden_state, axis=-1))

    # Default f32 compute path (faithful to the autocast-disabled torch layer).
    out = jax.block_until_ready(ifft1d_real(hidden_state))
    assert out.shape == hidden_state.shape and out.dtype == hidden_state.dtype
    assert jnp.allclose(out, ref, rtol=1e-3, atol=1e-5), "f32 mismatch vs jnp.fft.ifft"

    # Odd-length FFT axis exercises the odd-N fold / non-128 lane path.
    hs_odd = jax.random.normal(jax.random.PRNGKey(0), (batch, channels, 33), dtype=jnp.float32)
    ref_odd = jnp.real(jnp.fft.ifft(hs_odd, axis=-1))
    out_odd = jax.block_until_ready(ifft1d_real(hs_odd))
    assert jnp.allclose(out_odd, ref_odd, rtol=1e-3, atol=1e-5), "odd-N mismatch vs jnp.fft.ifft"

    # Optional bf16 compute path (half HBM traffic, full-rate MXU): looser tolerance.
    out_bf16 = jax.block_until_ready(ifft1d_real(hidden_state, compute_dtype=jnp.bfloat16))
    assert out_bf16.shape == hidden_state.shape
    assert jnp.allclose(out_bf16, ref, rtol=5e-2, atol=5e-3), "bf16 mismatch vs jnp.fft.ifft"

    print("KERNEL_OK")
</pallas_src>

<mosaic_0001>
module attributes {stable_mosaic.version = 11 : i64} {
  func.func @_ifft_real_kernel(%arg0: i32, %arg1: i32, %arg2: memref<8x128xf32, #tpu.memory_space<vmem>>, %arg3: memref<128x128xf32, #tpu.memory_space<vmem>>, %arg4: memref<8x128xf32, #tpu.memory_space<vmem>>) attributes {dimension_semantics = [#tpu.dimension_semantics<parallel>, #tpu.dimension_semantics<parallel>], iteration_bounds = array<i64: 1, 1>, scalar_prefetch = 0 : i64, scratch_operands = 0 : i64, tpu.core_type = #tpu.core_type<tc>, window_params = [{transform_indices = @transform_0, window_bounds = array<i64: 8, 128>}, {transform_indices = @transform_1, window_bounds = array<i64: 128, 128>}, {transform_indices = @transform_2, window_bounds = array<i64: 8, 128>}]} {
    %c0 = arith.constant 0 : index
    %c0_0 = arith.constant 0 : index
    %0 = vector.load %arg2[%c0, %c0_0] : memref<8x128xf32, #tpu.memory_space<vmem>>, vector<8x128xf32>
    %c0_1 = arith.constant 0 : index
    %c0_2 = arith.constant 0 : index
    %1 = vector.load %arg3[%c0_1, %c0_2] : memref<128x128xf32, #tpu.memory_space<vmem>>, vector<128x128xf32>
    %cst = arith.constant dense<0.000000e+00> : vector<8x128xf32>
    %2 = tpu.matmul %0, %1, %cst {dimension_numbers = #tpu.dot_dimension_numbers<[1], [0], [0], [1], [0, 0, 1, 1], [], []>} : vector<8x128xf32>, vector<128x128xf32>, vector<8x128xf32> -> vector<8x128xf32>
    %c0_3 = arith.constant 0 : index
    %c0_4 = arith.constant 0 : index
    %3 = vector.load %arg4[%c0_3, %c0_4] : memref<8x128xf32, #tpu.memory_space<vmem>>, vector<8x128xf32>
    tpu.vector_store %arg4[%c0_3, %c0_4], %2 {strides = array<i32>} : memref<8x128xf32, #tpu.memory_space<vmem>>, vector<8x128xf32>,
    return
  }
  func.func @transform_0(%arg0: i32, %arg1: i32) -> (i32, i32) {
    %c0_i32 = arith.constant 0 : i32
    %c0_i32_0 = arith.constant 0 : i32
    return %arg0, %c0_i32 : i32, i32
  }
  func.func @transform_1(%arg0: i32, %arg1: i32) -> (i32, i32) {
    %c0_i32 = arith.constant 0 : i32
    %c0_i32_0 = arith.constant 0 : i32
    return %c0_i32, %arg1 : i32, i32
  }
  func.func @transform_2(%arg0: i32, %arg1: i32) -> (i32, i32) {
    %c0_i32 = arith.constant 0 : i32
    return %arg0, %arg1 : i32, i32
  }
}

</mosaic_0001>

<llo_original>
// kernel: ifft1d_real.1
$region0: #{ifft1d_real.1}
  #allocation0 [shape = 'u32[]', space=smem, size = 0x4, offset = 0x4, fixed_abs, tag = 'smem constant byte address 0x4 - core index']
  #allocation1 [shape = 'u32[144,128]{1,0:T(1,128)}', space=vmem, size = 0x12000, scoped, tag = 'internal scratch']
  %s0 = inlined_call_operand.vmem [shape: f32[8,128], index: 0, kind: input, shape index: {}]
  %s1 = inlined_call_operand.hbm [shape: f32[128,128], index: 1, kind: input, shape index: {}]
  %s2 = inlined_call_operand.hbm [shape: f32[8,128], index: 2, kind: output, shape index: {}]
  %s3 = sld [smem:[#allocation0]]
  $region22: #{ifft1d_real.1} parent=0
    _
  %s5 = ssub.s32 1, %s3
  %s6 = scalar_select 0, %s5, %s3
  $region1: #{ifft1d_real.1} parent=0
    #allocation2 [shape = 'u8[65536]{0}', space=vmem, size = 0x10000, scoped, tag = 'input window, operand 1, single buffered']
    #allocation3 [shape = 's32[1]{0}', space=sflag, size = 0x4, scoped, tag = 'scoped memory for ifft1d_real.1']
    #allocation4 [shape = 's32[1]{0}', space=sflag, size = 0x4, scoped, tag = 'scoped memory for ifft1d_real.1']
    #allocation5 [shape = 'u8[4096]{0}', space=vmem, size = 0x1000, scoped, tag = 'output window, operand 0, single buffered']
    %7 = vsyncpa [#allocation3], 0
    %8 = vsyncpa [#allocation4], 0
    // Predicated region
    $region2: #{ifft1d_real.1} parent=1 // pred_check
      _
    $region3: #{ifft1d_real.1} parent=1 // pred_check_branch
      %10 = sbr.rel (0) target = $region5
    $region4: #{ifft1d_real.1} parent=1 // pred_region
      _
    $region5: #{ifft1d_real.1} parent=1 // pred_fallthru
      _
    // Predicated region
    $region6: #{ifft1d_real.1} parent=1 // pred_check
      _
    $region7: #{ifft1d_real.1} parent=1 // pred_check_branch
      %12 = sbr.rel (0) target = $region9
    $region8: #{ifft1d_real.1} parent=1 // pred_region
      %s14 = ssub.s32 2048, 2048
      %15 = vsyncadd [#allocation3], %s14
      %s16 = sshll.u32 [#allocation2], 4
      %s17 = int_to_ptr.vmem [resolvable:$true] %s16
      %22 = dma.hbm_to_vmem [thread:$0]  %s1, 2048, %s17, [#allocation3], 128, 128, 8
    $region9: #{ifft1d_real.1} parent=1 // pred_fallthru
      _
    // Predicated region
    $region10: #{ifft1d_real.1} parent=1 // pred_check
      _
    $region11: #{ifft1d_real.1} parent=1 // pred_check_branch
      %24 = sbr.rel (0) target = $region13
    $region12: #{ifft1d_real.1} parent=1 // pred_region
      %25 = dma.done [#allocation3], 2048
    $region13: #{ifft1d_real.1} parent=1 // pred_fallthru
      _
    %v26 = vld [vmem:[%s0] sm:$0xff]
    %v27 = vld [vmem:[#allocation2] sm:$0xff]
    %v28 = vld [vmem:[#allocation2 + $0x8] sm:$0xff]
    %v29 = vld [vmem:[#allocation2 + $0x10] sm:$0xff]
    %v30 = vld [vmem:[#allocation2 + $0x18] sm:$0xff]
    %v31 = vld [vmem:[#allocation2 + $0x20] sm:$0xff]
    %v32 = vld [vmem:[#allocation2 + $0x28] sm:$0xff]
    %v33 = vld [vmem:[#allocation2 + $0x30] sm:$0xff]
    %v34 = vld [vmem:[#allocation2 + $0x38] sm:$0xff]
    %v35 = vld [vmem:[#allocation2 + $0x40] sm:$0xff]
    %v36 = vld [vmem:[#allocation2 + $0x48] sm:$0xff]
    %v37 = vld [vmem:[#allocation2 + $0x50] sm:$0xff]
    %v38 = vld [vmem:[#allocation2 + $0x58] sm:$0xff]
    %v39 = vld [vmem:[#allocation2 + $0x60] sm:$0xff]
    %v40 = vld [vmem:[#allocation2 + $0x68] sm:$0xff]
    %v41 = vld [vmem:[#allocation2 + $0x70] sm:$0xff]
    %v42 = vld [vmem:[#allocation2 + $0x78] sm:$0xff]
    %43 = vmatprep.subr.mxu0 0.0
    %44 = vmatpush1.msra.mxu0 %v42
    %45 = vmatprep.subr.mxu0 0.0
    %46 = vmatpush1.msra.mxu0 %v41
    %47 = vmatprep.subr.mxu0 0.0
    %48 = vmatpush1.msra.mxu0 %v40
    %49 = vmatprep.subr.mxu0 0.0
    %50 = vmatpush1.msra.mxu0 %v39
    %51 = vmatprep.subr.mxu0 0.0
    %52 = vmatpush1.msra.mxu0 %v38
    %53 = vmatprep.subr.mxu0 0.0
    %54 = vmatpush1.msra.mxu0 %v37
    %55 = vmatprep.subr.mxu0 0.0
    %56 = vmatpush1.msra.mxu0 %v36
    %57 = vmatprep.subr.mxu0 0.0
    %58 = vmatpush1.msra.mxu0 %v35
    %59 = vmatprep.subr.mxu0 0.0
    %60 = vmatpush1.msra.mxu0 %v34
    %61 = vmatprep.subr.mxu0 0.0
    %62 = vmatpush1.msra.mxu0 %v33
    %63 = vmatprep.subr.mxu0 0.0
    %64 = vmatpush1.msra.mxu0 %v32
    %65 = vmatprep.subr.mxu0 0.0
    %66 = vmatpush1.msra.mxu0 %v31
    %67 = vmatprep.subr.mxu0 0.0
    %68 = vmatpush1.msra.mxu0 %v30
    %69 = vmatprep.subr.mxu0 0.0
    %70 = vmatpush1.msra.mxu0 %v29
    %71 = vmatprep.subr.mxu0 0.0
    %72 = vmatpush1.msra.mxu0 %v28
    %73 = vmatprep.subr.mxu0 0.0
    %74 = vmatpush1.msra.mxu0 %v27
    %75 = vmatprep.subr.mxu0 0.0
    %76 = vmatpush2.msra.mxu0 0.0
    %77 = vmatprep.subr.mxu0 0.0
    %78 = vmatpush2.msra.mxu0 0.0
    %79 = vmatprep.subr.mxu0 0.0
    %80 = vmatpush2.msra.mxu0 0.0
    %81 = vmatprep.subr.mxu0 0.0
    %82 = vmatpush2.msra.mxu0 0.0
    %83 = vmatprep.subr.mxu0 0.0
    %84 = vmatpush2.msra.mxu0 0.0
    %85 = vmatprep.subr.mxu0 0.0
    %86 = vmatpush2.msra.mxu0 0.0
    %87 = vmatprep.subr.mxu0 0.0
    %88 = vmatpush2.msra.mxu0 0.0
    %89 = vmatprep.subr.mxu0 0.0
    %90 = vmatpush2.msra.mxu0 0.0
    %91 = vmatprep.subr.mxu0 0.0
    %92 = vmatpush2.msra.mxu0 0.0
    %93 = vmatprep.subr.mxu0 0.0
    %94 = vmatpush2.msra.mxu0 0.0
    %95 = vmatprep.subr.mxu0 0.0
    %96 = vmatpush2.msra.mxu0 0.0
    %97 = vmatprep.subr.mxu0 0.0
    %98 = vmatpush2.msra.mxu0 0.0
    %99 = vmatprep.subr.mxu0 0.0
    %100 = vmatpush2.msra.mxu0 0.0
    %101 = vmatprep.subr.mxu0 0.0
    %102 = vmatpush2.msra.mxu0 0.0
    %103 = vmatprep.subr.mxu0 0.0
    %104 = vmatpush2.msra.mxu0 0.0
    %105 = vmatprep.subr.mxu0 0.0
    %106 = vmatpush2.msra.mxu0 0.0
    %107 = vmatprep.mubr.f32.mxu0 0.0
    %108 = vmatmul.mubr.f32.gmra.mxu0 %v26
    %v109 = vpop.f32.mrf.mxu0
    %v110 = vadd.f32 0.0, %v109
    %v111 = vpop.f32.mrf.mxu0
    %112 = vdwg.mxu0
    %113 = vst [vmem:[#allocation5] sm:$0xff] %v110
    // Predicated region
    $region14: #{ifft1d_real.1} parent=1 // pred_check
      _
    $region15: #{ifft1d_real.1} parent=1 // pred_check_branch
      %115 = sbr.rel (0) target = $region17
    $region16: #{ifft1d_real.1} parent=1 // pred_region
      %s117 = ssub.s32 128, 128
      %118 = vsyncadd [#allocation4], %s117
      %s120 = sshll.u32 [#allocation5], 4
      %s121 = int_to_ptr.vmem [resolvable:$true] %s120
      %123 = dma.vmem_to_hbm [thread:$0]  %s121, 128, %s2, [#allocation4]
    $region17: #{ifft1d_real.1} parent=1 // pred_fallthru
      _
    // Predicated region
    $region18: #{ifft1d_real.1} parent=1 // pred_check
      _
    $region19: #{ifft1d_real.1} parent=1 // pred_check_branch
      %125 = sbr.rel (0) target = $region21
    $region20: #{ifft1d_real.1} parent=1 // pred_region
      %126 = dma.done [#allocation4], 128
    $region21: #{ifft1d_real.1} parent=1 // pred_fallthru
      _
    %127 = vsyncpa [#allocation3], 1
    %128 = vsyncpa [#allocation4], 1

</llo_original>
